<compile_context>
chip_gen: v6e
topology: v6e:2x2x1
jax: 0.10.0
libtpu: 0.0.40
codegen_flags: <defaults>
</compile_context>

<pallas_src>
import functools

import jax
import jax.numpy as jnp
from jax import lax
from jax.experimental import pallas as pl
from jax.experimental.pallas import tpu as pltpu

LANES = 128          # TPU vreg lane count (fast axis)
BLOCK_N = 1024       # batch rows per grid step; must be a multiple of 8*128


def _gather_lanes(tab_ref, idx):
    """Vectorized gather: out[s, l] = tab[idx[s, l]].

    tab_ref: (1, n_chunks*128) f32, VMEM-resident (constant index_map).
    idx:     (S, 128) int32 with 0 <= idx < table length (clipped in wrapper).

    Uses the TPU lane dynamic-gather (jnp.take_along_axis along the last dim) on
    one 128-lane chunk of the table at a time; chunk results are combined with
    selects.  n_chunks is static, so the chunk loop unrolls at trace time.
    """
    s = idx.shape[0]
    n_chunks = tab_ref.shape[1] // LANES

    if n_chunks == 1:
        src = jnp.broadcast_to(tab_ref[...], (s, LANES))
        return jnp.take_along_axis(src, idx, axis=1, mode="promise_in_bounds")

    lane = jnp.bitwise_and(idx, LANES - 1)          # index within the 128-lane chunk
    chunk = lax.shift_right_logical(idx, 7)         # which 128-lane chunk
    out = jnp.zeros(idx.shape, jnp.float32)
    for c in range(n_chunks):                       # static unroll; tables are VMEM resident
        src = jnp.broadcast_to(tab_ref[:, c * LANES:(c + 1) * LANES], (s, LANES))
        g = jnp.take_along_axis(src, lane, axis=1, mode="promise_in_bounds")
        out = jnp.where(chunk == c, g, out)
    return out


def ncf_kernel(uidx_ref, iidx_ref,      # (block_n//128, 128) int32 blocks (VMEM, pipelined)
               pw_ref, ph_ref,          # (1, pad128(rows)) f32, VMEM resident
               out_ref):                # (block_n//128, 128) f32 block
    logits = (_gather_lanes(pw_ref, uidx_ref[...])
              + _gather_lanes(ph_ref, iidx_ref[...]))
    # Exact, numerically stable sigmoid in tanh form (tanh runs on the EUP).
    out_ref[...] = 0.5 * jnp.tanh(0.5 * logits) + 0.5


def _pad_to(x, m):
    return int(pl.cdiv(x, m) * m)


def _pick_vmem_limit(resident_bytes, per_step_bytes):
    """Size vmem_limit_bytes from actual usage instead of hardcoding.

    v7x has only 64 MiB of VMEM *per TensorCore* (and with the 'parallel' batch
    axis each core holds its own copy of the resident vectors); v5e/v6e have
    128 MiB.  Cap at 75% of capacity to leave headroom for pipeline buffers and
    internal compiler scratch.
    """
    try:
        cap = pltpu.get_tpu_info().vmem_capacity_bytes
    except Exception:                      # older jax / capacity query unavailable
        cap = 64 * 1024 * 1024             # assume the smallest (v7x per-TC) capacity
    needed = resident_bytes + 2 * per_step_bytes + (16 << 20)   # 2x: double buffering
    return int(min(max(needed, 32 << 20), (cap * 3) // 4))


@functools.partial(jax.jit, static_argnames=("block_n",))
def ncf_forward(x, W, H, lin_w, lin_b, *, block_n=BLOCK_N):
    """x: (N, 2) int [user, item]; W: (num_users, k); H: (num_items, k);
    lin_w: (2k, 1) or (1, 2k); lin_b: scalar.  Returns (N,) float32."""
    assert block_n % (8 * LANES) == 0, "block_n must be a multiple of 1024"
    N = x.shape[0]
    num_users, k = W.shape
    num_items = H.shape[0]

    # Accept either the transposed (2k, 1) layout or PyTorch nn.Linear's (1, 2k).
    if lin_w.shape == (1, 2 * k):
        lin_w = lin_w.T
    w_u = lin_w[:k, 0].astype(jnp.float32)
    w_h = lin_w[k:, 0].astype(jnp.float32)
    b = jnp.asarray(lin_b, jnp.float32).reshape(())

    # --- fold the Linear layer into the tables (exact):
    #     concat(W[u], H[i]) @ lin_w + b  ==  (W@w_u)[u] + (H@w_h)[i] + b
    pw = W.astype(jnp.float32) @ w_u + b            # bias folded into the user side
    ph = H.astype(jnp.float32) @ w_h

    up = _pad_to(num_users, LANES)
    ip = _pad_to(num_items, LANES)
    pw = jnp.pad(pw, (0, up - num_users)).reshape(1, up)    # lane-dense resident vectors
    ph = jnp.pad(ph, (0, ip - num_items)).reshape(1, ip)

    # --- indices: clamp (explicit OOB semantics), pad the batch, lay out as
    #     (rows, 128) so each kernel block is fully packed vregs.
    n_pad = _pad_to(max(N, 1), block_n)
    uidx = jnp.clip(x[:, 0].astype(jnp.int32), 0, num_users - 1)
    iidx = jnp.clip(x[:, 1].astype(jnp.int32), 0, num_items - 1)
    uidx = jnp.pad(uidx, (0, n_pad - N)).reshape(n_pad // LANES, LANES)
    iidx = jnp.pad(iidx, (0, n_pad - N)).reshape(n_pad // LANES, LANES)

    rows_per_block = block_n // LANES
    grid = (n_pad // block_n,)

    idx_spec = pl.BlockSpec((rows_per_block, LANES), lambda i: (i, 0))
    out_spec = pl.BlockSpec((rows_per_block, LANES), lambda i: (i, 0))
    pw_spec = pl.BlockSpec((1, up), lambda i: (0, 0))       # loaded once, stays resident
    ph_spec = pl.BlockSpec((1, ip), lambda i: (0, 0))

    resident_bytes = 4 * (up + ip)
    per_step_bytes = 4 * (2 * block_n + block_n)            # 2 int32 idx blocks + 1 f32 out block

    out = pl.pallas_call(
        ncf_kernel,
        out_shape=jax.ShapeDtypeStruct((n_pad // LANES, LANES), jnp.float32),
        grid_spec=pltpu.PrefetchScalarGridSpec(
            num_scalar_prefetch=0,
            grid=grid,
            in_specs=[idx_spec, idx_spec, pw_spec, ph_spec],
            out_specs=out_spec,
        ),
        compiler_params=pltpu.CompilerParams(
            dimension_semantics=("parallel",),               # batch axis: shard across TCs
            vmem_limit_bytes=_pick_vmem_limit(resident_bytes, per_step_bytes),
        ),
    )(uidx, iidx, pw, ph)

    return out.reshape(n_pad)[:N]


if __name__ == "__main__":
    # Small shapes consistent with the module.  num_users > 128 exercises the
    # multi-chunk gather path; N = 2500 exercises padding and a 3-step grid.
    num_users, num_items, embedding_k = 200, 64, 4
    N = 2500

    key = jax.random.PRNGKey(0)
    k_w, k_h, k_lw, k_lb, k_u, k_i = jax.random.split(key, 6)

    # Deterministic synthetic parameters (shapes match the torch module).
    W = jax.random.normal(k_w, (num_users, embedding_k), jnp.float32)          # nn.Embedding
    H = jax.random.normal(k_h, (num_items, embedding_k), jnp.float32)          # nn.Embedding
    lin_w = jax.random.normal(k_lw, (2 * embedding_k, 1), jnp.float32) * 0.1   # Linear weight^T
    lin_b = jax.random.normal(k_lb, (), jnp.float32) * 0.1                     # Linear bias

    user_idx = jax.random.randint(k_u, (N,), 0, num_users, jnp.int32)
    item_idx = jax.random.randint(k_i, (N,), 0, num_items, jnp.int32)
    x = jnp.stack([user_idx, item_idx], axis=1)                                # (N, 2)

    out = jax.block_until_ready(ncf_forward(x, W, H, lin_w, lin_b))

    # Plain-JAX reference (same math as the PyTorch module's forward).
    z_emb = jnp.concatenate([W[x[:, 0]], H[x[:, 1]]], axis=1)
    ref = jax.nn.sigmoid(z_emb @ lin_w + lin_b)[:, 0]

    assert out.shape == (N,)
    err = float(jnp.max(jnp.abs(out - ref)))
    assert jnp.allclose(out, ref, atol=1e-5), err

    print("KERNEL_OK")
</pallas_src>

<mosaic_0001>
module attributes {stable_mosaic.version = 11 : i64} {
  func.func @ncf_kernel(%arg0: i32, %arg1: memref<8x128xi32, #tpu.memory_space<vmem>>, %arg2: memref<8x128xi32, #tpu.memory_space<vmem>>, %arg3: memref<1x256xf32, #tpu.memory_space<vmem>>, %arg4: memref<1x128xf32, #tpu.memory_space<vmem>>, %arg5: memref<8x128xf32, #tpu.memory_space<vmem>>) attributes {dimension_semantics = [#tpu.dimension_semantics<parallel>], iteration_bounds = array<i64: 3>, scalar_prefetch = 0 : i64, scratch_operands = 0 : i64, tpu.core_type = #tpu.core_type<tc>, window_params = [{transform_indices = @transform_0, window_bounds = array<i64: 8, 128>}, {transform_indices = @transform_1, window_bounds = array<i64: 8, 128>}, {pipeline_mode = #tpu.pipeline_mode<synchronous>, transform_indices = @transform_2, window_bounds = array<i64: 1, 256>}, {pipeline_mode = #tpu.pipeline_mode<synchronous>, transform_indices = @transform_3, window_bounds = array<i64: 1, 128>}, {transform_indices = @transform_4, window_bounds = array<i64: 8, 128>}]} {
    %c0 = arith.constant 0 : index
    %c0_0 = arith.constant 0 : index
    %0 = vector.load %arg1[%c0, %c0_0] : memref<8x128xi32, #tpu.memory_space<vmem>>, vector<8x128xi32>
    %c127_i32 = arith.constant 127 : i32
    %1 = vector.broadcast %c127_i32 : i32 to vector<8x128xi32>
    %2 = arith.andi %0, %1 : vector<8x128xi32>
    %c7_i32 = arith.constant 7 : i32
    %3 = vector.broadcast %c7_i32 : i32 to vector<8x128xi32>
    %4 = arith.shrui %0, %3 : vector<8x128xi32>
    %cst = arith.constant 0.000000e+00 : f32
    %5 = vector.broadcast %cst : f32 to vector<8x128xf32>
    %c0_1 = arith.constant 0 : index
    %c0_2 = arith.constant 0 : index
    %6 = vector.load %arg3[%c0_1, %c0_2] : memref<1x256xf32, #tpu.memory_space<vmem>>, vector<1x128xf32>
    %7 = vector.shape_cast %6 : vector<1x128xf32> to vector<1x128xf32>
    %8 = vector.broadcast %7 : vector<1x128xf32> to vector<8x128xf32>
    %9 = vector.shape_cast %2 : vector<8x128xi32> to vector<8x128x1xi32>
    %10 = vector.shape_cast %9 : vector<8x128x1xi32> to vector<8x128xi32>
    %11 = tpu.dynamic_gather %8[%10] in [1] : vector<8x128xf32>, vector<8x128xi32> -> vector<8x128xf32>
    %c0_i32 = arith.constant 0 : i32
    %12 = vector.broadcast %c0_i32 : i32 to vector<8x128xi32>
    %13 = arith.cmpi eq, %4, %12 : vector<8x128xi32>
    %14 = arith.select %13, %11, %5 : vector<8x128xi1>, vector<8x128xf32>
    %c0_3 = arith.constant 0 : index
    %c128 = arith.constant 128 : index
    %15 = vector.load %arg3[%c0_3, %c128] : memref<1x256xf32, #tpu.memory_space<vmem>>, vector<1x128xf32>
    %16 = vector.shape_cast %15 : vector<1x128xf32> to vector<1x128xf32>
    %17 = vector.broadcast %16 : vector<1x128xf32> to vector<8x128xf32>
    %18 = vector.shape_cast %2 : vector<8x128xi32> to vector<8x128x1xi32>
    %19 = vector.shape_cast %18 : vector<8x128x1xi32> to vector<8x128xi32>
    %20 = tpu.dynamic_gather %17[%19] in [1] : vector<8x128xf32>, vector<8x128xi32> -> vector<8x128xf32>
    %c1_i32 = arith.constant 1 : i32
    %21 = vector.broadcast %c1_i32 : i32 to vector<8x128xi32>
    %22 = arith.cmpi eq, %4, %21 : vector<8x128xi32>
    %23 = arith.select %22, %20, %14 : vector<8x128xi1>, vector<8x128xf32>
    %c0_4 = arith.constant 0 : index
    %c0_5 = arith.constant 0 : index
    %24 = vector.load %arg2[%c0_4, %c0_5] : memref<8x128xi32, #tpu.memory_space<vmem>>, vector<8x128xi32>
    %c0_6 = arith.constant 0 : index
    %c0_7 = arith.constant 0 : index
    %25 = vector.load %arg4[%c0_6, %c0_7] : memref<1x128xf32, #tpu.memory_space<vmem>>, vector<1x128xf32>
    %26 = vector.shape_cast %25 : vector<1x128xf32> to vector<1x128xf32>
    %27 = vector.broadcast %26 : vector<1x128xf32> to vector<8x128xf32>
    %28 = vector.shape_cast %24 : vector<8x128xi32> to vector<8x128x1xi32>
    %29 = vector.shape_cast %28 : vector<8x128x1xi32> to vector<8x128xi32>
    %30 = tpu.dynamic_gather %27[%29] in [1] : vector<8x128xf32>, vector<8x128xi32> -> vector<8x128xf32>
    %31 = arith.addf %23, %30 : vector<8x128xf32>
    %cst_8 = arith.constant 5.000000e-01 : f32
    %32 = vector.broadcast %cst_8 : f32 to vector<8x128xf32>
    %33 = arith.mulf %32, %31 : vector<8x128xf32>
    %34 = math.tanh %33 : vector<8x128xf32>
    %cst_9 = arith.constant 5.000000e-01 : f32
    %35 = vector.broadcast %cst_9 : f32 to vector<8x128xf32>
    %36 = arith.mulf %35, %34 : vector<8x128xf32>
    %cst_10 = arith.constant 5.000000e-01 : f32
    %37 = vector.broadcast %cst_10 : f32 to vector<8x128xf32>
    %38 = arith.addf %36, %37 : vector<8x128xf32>
    %c0_11 = arith.constant 0 : index
    %c0_12 = arith.constant 0 : index
    %39 = vector.load %arg5[%c0_11, %c0_12] : memref<8x128xf32, #tpu.memory_space<vmem>>, vector<8x128xf32>
    tpu.vector_store %arg5[%c0_11, %c0_12], %38 {strides = array<i32>} : memref<8x128xf32, #tpu.memory_space<vmem>>, vector<8x128xf32>,
    return
  }
  func.func @transform_0(%arg0: i32) -> (i32, i32) {
    %c0_i32 = arith.constant 0 : i32
    %c0_i32_0 = arith.constant 0 : i32
    return %arg0, %c0_i32 : i32, i32
  }
  func.func @transform_1(%arg0: i32) -> (i32, i32) {
    %c0_i32 = arith.constant 0 : i32
    %c0_i32_0 = arith.constant 0 : i32
    return %arg0, %c0_i32 : i32, i32
  }
  func.func @transform_2(%arg0: i32) -> (i32, i32) {
    %c0_i32 = arith.constant 0 : i32
    %c0_i32_0 = arith.constant 0 : i32
    %c0_i32_1 = arith.constant 0 : i32
    return %c0_i32, %c0_i32_0 : i32, i32
  }
  func.func @transform_3(%arg0: i32) -> (i32, i32) {
    %c0_i32 = arith.constant 0 : i32
    %c0_i32_0 = arith.constant 0 : i32
    %c0_i32_1 = arith.constant 0 : i32
    return %c0_i32, %c0_i32_0 : i32, i32
  }
  func.func @transform_4(%arg0: i32) -> (i32, i32) {
    %c0_i32 = arith.constant 0 : i32
    %c0_i32_0 = arith.constant 0 : i32
    return %arg0, %c0_i32 : i32, i32
  }
}

</mosaic_0001>

<llo_original>
// kernel: ncf_forward.1
$region0: #{ncf_forward.1}
  #allocation0 [shape = 'u32[]', space=smem, size = 0x4, offset = 0x4, fixed_abs, tag = 'smem constant byte address 0x4 - core index']
  #allocation1 [shape = 'u32[144,128]{1,0:T(1,128)}', space=vmem, size = 0x12000, scoped, tag = 'internal scratch']
  %s0 = inlined_call_operand.vmem [shape: s32[24,128], index: 0, kind: input, shape index: {}]
  %s1 = inlined_call_operand.vmem [shape: s32[24,128], index: 1, kind: input, shape index: {}]
  %s2 = inlined_call_operand.vmem [shape: f32[1,256], index: 2, kind: input, shape index: {}]
  %s3 = inlined_call_operand.vmem [shape: f32[1,128], index: 3, kind: input, shape index: {}]
  %s4 = inlined_call_operand.hbm [shape: f32[24,128], index: 4, kind: output, shape index: {}]
  %s5 = sld [smem:[#allocation0]]
  $region49: #{ncf_forward.1} parent=0
    _
  %s7 = ssub.s32 1, %s5
  %s8 = scalar_select 0, %s7, %s5
  $region1: #{ncf_forward.1} parent=0
    #allocation2 [shape = 'u8[8192]{0}', space=vmem, size = 0x2000, scoped, tag = 'output window, operand 0']
    #allocation3 [shape = 's32[2]{0}', space=sflag, size = 0x8, scoped, tag = 'scoped memory for ncf_forward.1']
    %9 = vsyncpa [#allocation3], 0
    %s10 = scalar_lea.sflag [#allocation3], 1
    %11 = vsyncpa %s10, 0
    loop: start=0, step=1, limit=5
    $region2: #{ncf_forward.1} parent=1 // loop_pre_header
      _
    $region3: #{ncf_forward.1} parent=1 // loop_header
      %s13 = sphi 0, %s17
      %p14 = scmp.ge.s32.totalorder %s13, 5
      %s23 = sphi 0, %s25
      %s26 = sphi 0, %s23
      %s27 = sphi 0, %s26
      %s43 = sphi 0, %s27
      %s49 = sphi 0, %s51
      %s52 = sphi 0, %s49
      %s53 = sphi 0, %s52
      %s69 = sphi 0, %s53
      %s73 = sphi 0, %s73
      %s75 = sphi 0, %s73
      %s76 = sphi 0, %s75
      %s90 = sphi 0, %s76
      %s94 = sphi 0, %s94
      %s96 = sphi 0, %s94
      %s97 = sphi 0, %s96
      %s111 = sphi 0, %s97
      %s117 = sphi 0, %s119
      %s120 = sphi 0, %s117
      %s121 = sphi 0, %s120
      %s137 = sphi 0, %s121
    $region4: #{ncf_forward.1} parent=1 // loop_header_branch
      %16 = sbr.rel (%p14) target = $region8
    $region5: #{ncf_forward.1} parent=1 // loop_body
      %s18 = ssub.s32 %s13, 1
      %s19 = ssub.s32 %s13, 2
      %s20 = sadd.s32 %s13, 1
      %s21 = ssub.s32 %s13, %s20
      %p22 = scmp.eq.s32.totalorder %s21, 0
      %s24 = sadd.s32 %s23, 1
      %s25 = scalar_select %p22, %s23, %s24
      %p28 = pneg %p22
      %p29 = scmp.eq.s32.totalorder %s13, 2
      %p30 = por %p28, %p29
      %p31 = scmp.ne.s32.totalorder %s23, %s26
      %p32 = scmp.eq.s32.totalorder %s13, 0
      %p33 = por %p31, %p32
      %p34 = scmp.ne.s32.totalorder %s23, %s26
      %p35 = scmp.eq.s32.totalorder %s18, 2
      %p36 = por %p34, %p35
      %p37 = scmp.ne.s32.totalorder %s26, %s27
      %p38 = scmp.eq.s32.totalorder %s18, 0
      %p39 = por %p37, %p38
      %p40 = scmp.ne.s32.totalorder %s26, %s27
      %p41 = scmp.eq.s32.totalorder %s19, 2
      %p42 = por %p40, %p41
      %p44 = scmp.ne.s32.totalorder %s27, %s43
      %p45 = scmp.eq.s32.totalorder %s19, 0
      %p46 = por %p44, %p45
      %s47 = ssub.s32 %s13, %s20
      %p48 = scmp.eq.s32.totalorder %s47, 0
      %s50 = sadd.s32 %s49, 1
      %s51 = scalar_select %p48, %s49, %s50
      %p54 = pneg %p48
      %p55 = scmp.eq.s32.totalorder %s13, 2
      %p56 = por %p54, %p55
      %p57 = scmp.ne.s32.totalorder %s49, %s52
      %p58 = scmp.eq.s32.totalorder %s13, 0
      %p59 = por %p57, %p58
      %p60 = scmp.ne.s32.totalorder %s49, %s52
      %p61 = scmp.eq.s32.totalorder %s18, 2
      %p62 = por %p60, %p61
      %p63 = scmp.ne.s32.totalorder %s52, %s53
      %p64 = scmp.eq.s32.totalorder %s18, 0
      %p65 = por %p63, %p64
      %p66 = scmp.ne.s32.totalorder %s52, %s53
      %p67 = scmp.eq.s32.totalorder %s19, 2
      %p68 = por %p66, %p67
      %p70 = scmp.ne.s32.totalorder %s53, %s69
      %p71 = scmp.eq.s32.totalorder %s19, 0
      %p72 = por %p70, %p71
      %s74 = sadd.s32 %s73, 1
      %p77 = scmp.eq.s32.totalorder %s13, 2
      %p78 = scmp.ne.s32.totalorder %s73, %s75
      %p79 = scmp.eq.s32.totalorder %s13, 0
      %p80 = por %p78, %p79
      %p81 = scmp.ne.s32.totalorder %s73, %s75
      %p82 = scmp.eq.s32.totalorder %s18, 2
      %p83 = por %p81, %p82
      %p84 = scmp.ne.s32.totalorder %s75, %s76
      %p85 = scmp.eq.s32.totalorder %s18, 0
      %p86 = por %p84, %p85
      %p87 = scmp.ne.s32.totalorder %s75, %s76
      %p88 = scmp.eq.s32.totalorder %s19, 2
      %p89 = por %p87, %p88
      %p91 = scmp.ne.s32.totalorder %s76, %s90
      %p92 = scmp.eq.s32.totalorder %s19, 0
      %p93 = por %p91, %p92
      %s95 = sadd.s32 %s94, 1
      %p98 = scmp.eq.s32.totalorder %s13, 2
      %p99 = scmp.ne.s32.totalorder %s94, %s96
      %p100 = scmp.eq.s32.totalorder %s13, 0
      %p101 = por %p99, %p100
      %p102 = scmp.ne.s32.totalorder %s94, %s96
      %p103 = scmp.eq.s32.totalorder %s18, 2
      %p104 = por %p102, %p103
      %p105 = scmp.ne.s32.totalorder %s96, %s97
      %p106 = scmp.eq.s32.totalorder %s18, 0
      %p107 = por %p105, %p106
      %p108 = scmp.ne.s32.totalorder %s96, %s97
      %p109 = scmp.eq.s32.totalorder %s19, 2
      %p110 = por %p108, %p109
      %p112 = scmp.ne.s32.totalorder %s97, %s111
      %p113 = scmp.eq.s32.totalorder %s19, 0
      %p114 = por %p112, %p113
      %s115 = ssub.s32 %s13, %s20
      %p116 = scmp.eq.s32.totalorder %s115, 0
      %s118 = sadd.s32 %s117, 1
      %s119 = scalar_select %p116, %s117, %s118
      %p122 = pneg %p116
      %p123 = scmp.eq.s32.totalorder %s13, 2
      %p124 = por %p122, %p123
      %p125 = scmp.ne.s32.totalorder %s117, %s120
      %p126 = scmp.eq.s32.totalorder %s13, 0
      %p127 = por %p125, %p126
      %p128 = scmp.ne.s32.totalorder %s117, %s120
      %p129 = scmp.eq.s32.totalorder %s18, 2
      %p130 = por %p128, %p129
      %p131 = scmp.ne.s32.totalorder %s120, %s121
      %p132 = scmp.eq.s32.totalorder %s18, 0
      %p133 = por %p131, %p132
      %p134 = scmp.ne.s32.totalorder %s120, %s121
      %p135 = scmp.eq.s32.totalorder %s19, 2
      %p136 = por %p134, %p135
      %p138 = scmp.ne.s32.totalorder %s121, %s137
      %p139 = scmp.eq.s32.totalorder %s19, 0
      %p140 = por %p138, %p139
      %p141 = scmp.le.s32.totalorder 1, %s13
      %p142 = scmp.lt.s32.totalorder %s13, 4
      %p143 = pnand %p141, %p142
      %p144 = pneg %p143
      // Predicated region
      $region9: #{ncf_forward.1} parent=5 // pred_check
        _
      $region10: #{ncf_forward.1} parent=5 // pred_check_branch
        %146 = sbr.rel (%p143) target = $region12
      $region11: #{ncf_forward.1} parent=5 // pred_region
        %s147 = ssub.s32 %s13, 1
        // Predicated region
        $region13: #{ncf_forward.1} parent=11 // pred_check
          %p148 = pneg %p86
        $region14: #{ncf_forward.1} parent=11 // pred_check_branch
          %150 = sbr.rel (%p148) target = $region16
        $region15: #{ncf_forward.1} parent=11 // pred_region
          _
        $region16: #{ncf_forward.1} parent=11 // pred_fallthru
          _
        // Predicated region
        $region17: #{ncf_forward.1} parent=11 // pred_check
          %p151 = pneg %p107
        $region18: #{ncf_forward.1} parent=11 // pred_check_branch
          %153 = sbr.rel (%p151) target = $region20
        $region19: #{ncf_forward.1} parent=11 // pred_region
          _
        $region20: #{ncf_forward.1} parent=11 // pred_fallthru
          _
      $region12: #{ncf_forward.1} parent=5 // pred_fallthru
        _
      %p154 = scmp.lt.s32.totalorder %s13, 3
      // Predicated region
      $region21: #{ncf_forward.1} parent=5 // pred_check
        %p155 = pneg %p154
      $region22: #{ncf_forward.1} parent=5 // pred_check_branch
        %157 = sbr.rel (%p155) target = $region24
      $region23: #{ncf_forward.1} parent=5 // pred_region
        // Predicated region
        $region25: #{ncf_forward.1} parent=23 // pred_check
          %p158 = pneg %p33
        $region26: #{ncf_forward.1} parent=23 // pred_check_branch
          %160 = sbr.rel (%p158) target = $region28
        $region27: #{ncf_forward.1} parent=23 // pred_region
          %p161 = scmp.lt.s32.totalorder %s13, 2
          %s162 = scalar_select %p161, %s13, 2
          %s163 = smul.addr %s162, 8
          %s164 = scalar_lea.vmem %s0, %s163
        $region28: #{ncf_forward.1} parent=23 // pred_fallthru
          _
        // Predicated region
        $region29: #{ncf_forward.1} parent=23 // pred_check
          %p165 = pneg %p59
        $region30: #{ncf_forward.1} parent=23 // pred_check_branch
          %167 = sbr.rel (%p165) target = $region32
        $region31: #{ncf_forward.1} parent=23 // pred_region
          %p168 = scmp.lt.s32.totalorder %s13, 2
          %s169 = scalar_select %p168, %s13, 2
          %s170 = smul.addr %s169, 8
          %s171 = scalar_lea.vmem %s1, %s170
        $region32: #{ncf_forward.1} parent=23 // pred_fallthru
          _
      $region24: #{ncf_forward.1} parent=5 // pred_fallthru
        _
      %p172 = scmp.le.s32.totalorder 1, %s13
      %p173 = scmp.lt.s32.totalorder %s13, 4
      %p174 = pnand %p172, %p173
      %p175 = pneg %p174
      // Predicated region
      $region33: #{ncf_forward.1} parent=5 // pred_check
        _
      $region34: #{ncf_forward.1} parent=5 // pred_check_branch
        %177 = sbr.rel (%p174) target = $region36
      $region35: #{ncf_forward.1} parent=5 // pred_region
        %s178 = ssub.s32 %s13, 1
        %p179 = scmp.lt.s32.totalorder %s18, 2
        %s180 = scalar_select %p179, %s18, 2
        %s181 = smul.addr %s180, 8
        %s182 = scalar_lea.vmem %s0, %s181
        %p183 = pneg %p39
        %p184 = pneg %p36
        %p185 = scmp.lt.s32.totalorder %s18, 2
        %s186 = scalar_select %p185, %s18, 2
        %s187 = smul.addr %s186, 8
        %s188 = scalar_lea.vmem %s1, %s187
        %p189 = pneg %p65
        %p190 = pneg %p62
        %p191 = pneg %p86
        %p192 = pneg %p83
        %p193 = pneg %p107
        %p194 = pneg %p104
        %p195 = pneg %p133
        %p196 = pneg %p130
        %s197 = sand.u32 %s120, 1
        %s198 = scalar_lea.sflag [#allocation3], %s197
        %s199 = sand.u32 %s120, 1
        %s200 = smul.addr %s199, 8
        %s201 = scalar_lea.vmem [#allocation2], %s200
        %p202 = scmp.lt.s32.totalorder %s18, 2
        %s203 = scalar_select %p202, %s18, 2
        %s204 = smul.addr %s203, 8
        %s205 = scalar_lea.vmem %s0, %s204
        %p206 = scmp.lt.s32.totalorder %s18, 2
        %s207 = scalar_select %p206, %s18, 2
        %s208 = smul.addr %s207, 8
        %s209 = scalar_lea.vmem %s1, %s208
        %v210 = vld [vmem:[%s205] sm:$0xff]
        %v211 = vand.u32 %v210, 127
        %v212 = vshrl.u32 %v210, 7
        %v213 = vld [vmem:[%s2] sm:$0x1]
        %v215 = vlaneseq
        %v216 = vshrl.u32 %v215, 7
        %v217 = vsub.s32 0, %v216
        %v218 = vrot.slane %v213, %v217
        %220 = vset.pattern.permute.xlu0 %v211
        %221 = vperm.xlu0 %220, %v218
        %v222 = vpop.permute.xlu0 %221
        %vm223 = vcmp.eq.s32.totalorder %v212, 0
        %v224 = vsel %vm223, %v222, 0.0
        %v225 = vld [vmem:[%s2 + $0x1] sm:$0x1]
        %v227 = vlaneseq
        %v228 = vshrl.u32 %v227, 7
        %v229 = vsub.s32 0, %v228
        %v230 = vrot.slane %v225, %v229
        %232 = vset.pattern.permute.xlu0 %v211
        %233 = vperm.xlu0 %232, %v230
        %v234 = vpop.permute.xlu0 %233
        %vm235 = vcmp.eq.s32.totalorder %v212, 1
        %v236 = vsel %vm235, %v234, %v224
        %v237 = vld [vmem:[%s209] sm:$0xff]
        %v238 = vld [vmem:[%s3] sm:$0x1]
        %v240 = vlaneseq
        %v241 = vshrl.u32 %v240, 7
        %v242 = vsub.s32 0, %v241
        %v243 = vrot.slane %v238, %v242
        %245 = vset.pattern.permute.xlu0 %v237
        %246 = vperm.xlu0 %245, %v243
        %v247 = vpop.permute.xlu0 %246
        %v248 = vadd.f32 %v236, %v247
        %v249 = vmul.f32 %v248, 0.5
        %v250 = vtanh.pop %v249
        %v251 = vmul.f32 %v250, 0.5
        %v252 = vadd.f32 %v251, 0.5
        %253 = vst [vmem:[%s201] sm:$0xff] %v252
        %s254 = sand.u32 %s120, 1
        %s255 = scalar_lea.sflag [#allocation3], %s254
        %s256 = sand.u32 %s120, 1
        %s257 = smul.addr %s256, 8
        %s258 = scalar_lea.vmem [#allocation2], %s257
        // Predicated region
        $region37: #{ncf_forward.1} parent=35 // pred_check
          %p259 = pneg %p130
        $region38: #{ncf_forward.1} parent=35 // pred_check_branch
          %261 = sbr.rel (%p259) target = $region40
        $region39: #{ncf_forward.1} parent=35 // pred_region
          %s263 = ssub.s32 128, 128
          %264 = vsyncadd %s255, %s263
          %s265 = smul.addr %s18, 128
          %s266 = scalar_lea.hbm %s4, %s265
          %s268 = sshll.u32 %s258, 4
          %s269 = int_to_ptr.vmem [resolvable:$true] %s268
          %271 = dma.vmem_to_hbm [thread:$0]  %s269, 128, %s266, %s255
        $region40: #{ncf_forward.1} parent=35 // pred_fallthru
          _
      $region36: #{ncf_forward.1} parent=5 // pred_fallthru
        _
      %p272 = scmp.le.s32.totalorder 2, %s13
      // Predicated region
      $region41: #{ncf_forward.1} parent=5 // pred_check
        %p273 = pneg %p272
      $region42: #{ncf_forward.1} parent=5 // pred_check_branch
        %275 = sbr.rel (%p273) target = $region44
      $region43: #{ncf_forward.1} parent=5 // pred_region
        %s276 = ssub.s32 %s13, 2
        // Predicated region
        $region45: #{ncf_forward.1} parent=43 // pred_check
          %p277 = pneg %p136
        $region46: #{ncf_forward.1} parent=43 // pred_check_branch
          %279 = sbr.rel (%p277) target = $region48
        $region47: #{ncf_forward.1} parent=43 // pred_region
          %s280 = sand.u32 %s121, 1
          %s281 = scalar_lea.sflag [#allocation3], %s280
          %s282 = sand.u32 %s121, 1
          %s283 = smul.addr %s282, 8
          %s284 = scalar_lea.vmem [#allocation2], %s283
          %285 = dma.done %s281, 128
        $region48: #{ncf_forward.1} parent=43 // pred_fallthru
          _
      $region44: #{ncf_forward.1} parent=5 // pred_fallthru
        _
    $region6: #{ncf_forward.1} parent=1 // loop_footer
      %s17 = sadd.s32 1, %s13
    $region7: #{ncf_forward.1} parent=1 // loop_footer_branch
      %12 = sbr.rel target = $region3
    $region8: #{ncf_forward.1} parent=1 // loop_exit
      _
    %286 = vsyncpa [#allocation3], 1
    %s287 = scalar_lea.sflag [#allocation3], 1
    %288 = vsyncpa %s287, 1

</llo_original>
